<compile_context>
chip_gen: v5e
topology: v5e:2x2
jax: 0.10.0
libtpu: 0.0.40
codegen_flags: <defaults>
</compile_context>

<pallas_src>
import jax
import jax.numpy as jnp
from jax.experimental import pallas as pl
from jax.experimental.pallas import tpu as pltpu

INPUT_SIZE = 28 * 28        # 784 (multiple of 8 -> fine as sublane dim of the weight block)
NUM_CLASSES = 10
N_PAD = 128                 # lane-dense padded class dim


def _round_up(x, m):
    return ((x + m - 1) // m) * m


def _linear_kernel(x_ref, w_ref, b_ref, o_ref):
    # x_ref: (tb, 784) f32   w_ref: (784, 128) bf16   b_ref: (1, 128) f32   o_ref: (tb, 128) f32
    x_bf16 = x_ref[...].astype(jnp.bfloat16)            # cast rides free VPU slots
    o_ref[...] = (
        jnp.dot(x_bf16, w_ref[...], preferred_element_type=jnp.float32)
        + b_ref[...]
    )


def prepare_params(weight, bias):
    """One-time layout prep for the Pallas kernel.

    weight: (10, 784) f32 (PyTorch nn.Linear (out, in) layout)
    bias:   (10,) f32
    returns (w_pad (784, 128) bf16, b_pad (1, 128) f32)
    """
    w_pad = jnp.zeros((INPUT_SIZE, N_PAD), jnp.bfloat16)
    w_pad = w_pad.at[:, :NUM_CLASSES].set(weight.T.astype(jnp.bfloat16))
    b_pad = jnp.zeros((1, N_PAD), jnp.float32)
    b_pad = b_pad.at[0, :NUM_CLASSES].set(bias.astype(jnp.float32))
    return w_pad, b_pad


def mnist_model_forward(xb, w_pad, b_pad, *, tb=1024):
    """Pallas equivalent of MnistModel.forward with pre-prepared params.

    xb:    (B, 1, 28, 28) float32 (or anything reshapeable to (B, 784))
    w_pad: (784, 128) bfloat16 from prepare_params
    b_pad: (1, 128) float32 from prepare_params
    returns (B, 10) float32 logits
    """
    B = xb.shape[0]
    x2d = xb.reshape(B, INPUT_SIZE).astype(jnp.float32)   # free view, no pad / no cast pass

    # Batch tile: multiple of 16 (bf16 sublane tile after the in-kernel cast),
    # capped near B so tiny batches don't request huge blocks.
    tb = max(16, min(_round_up(tb, 16), _round_up(B, 16)))
    num_tiles = pl.cdiv(B, tb)                             # partial final block is fine

    cost = pl.CostEstimate(
        flops=2 * B * INPUT_SIZE * N_PAD,
        transcendentals=0,
        bytes_accessed=(B * INPUT_SIZE * 4) + (INPUT_SIZE * N_PAD * 2)
        + (N_PAD * 4) + (B * N_PAD * 4),
    )

    out = pl.pallas_call(
        _linear_kernel,
        out_shape=jax.ShapeDtypeStruct((B, N_PAD), jnp.float32),
        grid_spec=pl.GridSpec(
            grid=(num_tiles,),
            in_specs=[
                pl.BlockSpec((tb, INPUT_SIZE), lambda i: (i, 0)),   # x tiles stream
                pl.BlockSpec((INPUT_SIZE, N_PAD), lambda i: (0, 0)),  # weight resident
                pl.BlockSpec((1, N_PAD), lambda i: (0, 0)),           # bias resident
            ],
            out_specs=pl.BlockSpec((tb, N_PAD), lambda i: (i, 0)),
        ),
        compiler_params=pltpu.CompilerParams(
            dimension_semantics=("parallel",),                        # megacore on v7x
        ),
        cost_estimate=cost,
    )(x2d, w_pad, b_pad)

    return out[:B, :NUM_CLASSES]


def mnist_model_apply(xb, weight, bias, *, tb=1024):
    """Convenience wrapper taking raw PyTorch-layout params."""
    w_pad, b_pad = prepare_params(weight, bias)
    return mnist_model_forward(xb, w_pad, b_pad, tb=tb)


def init_params(key):
    """Deterministic init mimicking nn.Linear(784, 10) default U(-k, k), k=1/sqrt(fan_in)."""
    k_w, k_b = jax.random.split(key)
    bound = 1.0 / jnp.sqrt(jnp.float32(INPUT_SIZE))
    weight = jax.random.uniform(
        k_w, (NUM_CLASSES, INPUT_SIZE), jnp.float32, minval=-bound, maxval=bound
    )
    bias = jax.random.uniform(
        k_b, (NUM_CLASSES,), jnp.float32, minval=-bound, maxval=bound
    )
    return weight, bias


def _reference(xb, weight, bias):
    """Pure-JAX reference with matching bf16 input/weight rounding, f32 accumulation."""
    B = xb.shape[0]
    x_r = xb.reshape(B, INPUT_SIZE).astype(jnp.bfloat16).astype(jnp.float32)
    w_r = weight.T.astype(jnp.bfloat16).astype(jnp.float32)
    return (
        jnp.dot(x_r, w_r, precision=jax.lax.Precision.HIGHEST) + bias[None, :]
    )


if __name__ == "__main__":
    key = jax.random.PRNGKey(0)
    k_x, k_x2, k_p = jax.random.split(key, 3)

    weight, bias = init_params(k_p)
    w_pad, b_pad = prepare_params(weight, bias)

    # Primary smoke test: the module's DataLoader batch_size=128 (single full tile).
    B = 128
    xb = jax.random.normal(k_x, (B, 1, 28, 28), jnp.float32)
    logits = jax.block_until_ready(mnist_model_forward(xb, w_pad, b_pad))
    assert logits.shape == (B, NUM_CLASSES)
    assert jnp.allclose(logits, _reference(xb, weight, bias), atol=2e-3, rtol=2e-3)

    # Secondary test: B not a multiple of the tile -> exercises the partial final block.
    B2 = 45
    xb2 = jax.random.normal(k_x2, (B2, 1, 28, 28), jnp.float32)
    logits2 = jax.block_until_ready(mnist_model_forward(xb2, w_pad, b_pad))
    assert logits2.shape == (B2, NUM_CLASSES)
    assert jnp.allclose(logits2, _reference(xb2, weight, bias), atol=2e-3, rtol=2e-3)

    # TODO(synk): training_step / validation_step (cross_entropy, accuracy, epoch
    # aggregation) are left to plain JAX; only the module's forward is a Pallas kernel.

    print("KERNEL_OK")
</pallas_src>

<mosaic_0001>
module attributes {stable_mosaic.version = 11 : i64} {
  func.func @_linear_kernel(%arg0: i32, %arg1: memref<128x784xf32, #tpu.memory_space<vmem>>, %arg2: memref<784x128xbf16, #tpu.memory_space<vmem>>, %arg3: memref<1x128xf32, #tpu.memory_space<vmem>>, %arg4: memref<128x128xf32, #tpu.memory_space<vmem>>) attributes {dimension_semantics = [#tpu.dimension_semantics<parallel>], iteration_bounds = array<i64: 1>, scalar_prefetch = 0 : i64, scratch_operands = 0 : i64, tpu.core_type = #tpu.core_type<tc>, window_params = [{transform_indices = @transform_0, window_bounds = array<i64: 128, 784>}, {pipeline_mode = #tpu.pipeline_mode<synchronous>, transform_indices = @transform_1, window_bounds = array<i64: 784, 128>}, {pipeline_mode = #tpu.pipeline_mode<synchronous>, transform_indices = @transform_2, window_bounds = array<i64: 1, 128>}, {transform_indices = @transform_3, window_bounds = array<i64: 128, 128>}]} {
    %c0 = arith.constant 0 : index
    %c0_0 = arith.constant 0 : index
    %0 = vector.load %arg1[%c0, %c0_0] : memref<128x784xf32, #tpu.memory_space<vmem>>, vector<128x784xf32>
    %1 = arith.truncf %0 : vector<128x784xf32> to vector<128x784xbf16>
    %c0_1 = arith.constant 0 : index
    %c0_2 = arith.constant 0 : index
    %2 = vector.load %arg2[%c0_1, %c0_2] : memref<784x128xbf16, #tpu.memory_space<vmem>>, vector<784x128xbf16>
    %cst = arith.constant dense<0.000000e+00> : vector<128x128xf32>
    %3 = tpu.matmul %1, %2, %cst {dimension_numbers = #tpu.dot_dimension_numbers<[1], [0], [0], [1], [0, 0, 1, 1], [], []>} : vector<128x784xbf16>, vector<784x128xbf16>, vector<128x128xf32> -> vector<128x128xf32>
    %c0_3 = arith.constant 0 : index
    %c0_4 = arith.constant 0 : index
    %4 = vector.load %arg3[%c0_3, %c0_4] : memref<1x128xf32, #tpu.memory_space<vmem>>, vector<1x128xf32>
    %5 = vector.broadcast %4 : vector<1x128xf32> to vector<128x128xf32>
    %6 = arith.addf %3, %5 : vector<128x128xf32>
    %c0_5 = arith.constant 0 : index
    %c0_6 = arith.constant 0 : index
    %7 = vector.load %arg4[%c0_5, %c0_6] : memref<128x128xf32, #tpu.memory_space<vmem>>, vector<128x128xf32>
    tpu.vector_store %arg4[%c0_5, %c0_6], %6 {strides = array<i32>} : memref<128x128xf32, #tpu.memory_space<vmem>>, vector<128x128xf32>,
    return
  }
  func.func @transform_0(%arg0: i32) -> (i32, i32) {
    %c0_i32 = arith.constant 0 : i32
    %c0_i32_0 = arith.constant 0 : i32
    return %arg0, %c0_i32 : i32, i32
  }
  func.func @transform_1(%arg0: i32) -> (i32, i32) {
    %c0_i32 = arith.constant 0 : i32
    %c0_i32_0 = arith.constant 0 : i32
    %c0_i32_1 = arith.constant 0 : i32
    return %c0_i32, %c0_i32_0 : i32, i32
  }
  func.func @transform_2(%arg0: i32) -> (i32, i32) {
    %c0_i32 = arith.constant 0 : i32
    %c0_i32_0 = arith.constant 0 : i32
    %c0_i32_1 = arith.constant 0 : i32
    return %c0_i32, %c0_i32_0 : i32, i32
  }
  func.func @transform_3(%arg0: i32) -> (i32, i32) {
    %c0_i32 = arith.constant 0 : i32
    %c0_i32_0 = arith.constant 0 : i32
    return %arg0, %c0_i32 : i32, i32
  }
}

</mosaic_0001>

<llo_original>
// kernel: tpu_custom_call.1
$region0: #{tpu_custom_call.1}
  #allocation0 [shape = 'u32[]', space=smem, size = 0x4, offset = 0x4, fixed_abs, tag = 'smem constant byte address 0x4 - core index']
  #allocation1 [shape = 'u32[72,128]{1,0:T(1,128)}', space=vmem, size = 0x9000, scoped, tag = 'internal scratch']
  %s0 = inlined_call_operand.vmem [shape: f32[128,784], index: 0, kind: input, shape index: {}]
  %s1 = inlined_call_operand.vmem [shape: bf16[784,128], index: 1, kind: input, shape index: {}]
  %s2 = inlined_call_operand.vmem [shape: f32[1,128], index: 2, kind: input, shape index: {}]
  %s3 = inlined_call_operand.hbm [shape: f32[128,128], index: 3, kind: output, shape index: {}]
  %s4 = sld [smem:[#allocation0]]
  $region22: #{tpu_custom_call.1} parent=0
    _
  %s6 = ssub.s32 1, %s4
  %s7 = scalar_select 0, %s6, %s4
  $region1: #{tpu_custom_call.1} parent=0
    #allocation2 [shape = 'u8[65536]{0}', space=vmem, size = 0x10000, scoped, tag = 'output window, operand 0, single buffered']
    #allocation3 [shape = 's32[1]{0}', space=sflag, size = 0x4, scoped, tag = 'scoped memory for tpu_custom_call.1']
    %8 = vsyncpa [#allocation3], 0
    // Predicated region
    $region2: #{tpu_custom_call.1} parent=1 // pred_check
      _
    $region3: #{tpu_custom_call.1} parent=1 // pred_check_branch
      %10 = sbr.rel (0) target = $region5
    $region4: #{tpu_custom_call.1} parent=1 // pred_region
      _
    $region5: #{tpu_custom_call.1} parent=1 // pred_fallthru
      _
    // Predicated region
    $region6: #{tpu_custom_call.1} parent=1 // pred_check
      _
    $region7: #{tpu_custom_call.1} parent=1 // pred_check_branch
      %12 = sbr.rel (0) target = $region9
    $region8: #{tpu_custom_call.1} parent=1 // pred_region
      _
    $region9: #{tpu_custom_call.1} parent=1 // pred_fallthru
      _
    // Predicated region
    $region10: #{tpu_custom_call.1} parent=1 // pred_check
      _
    $region11: #{tpu_custom_call.1} parent=1 // pred_check_branch
      %14 = sbr.rel (0) target = $region13
    $region12: #{tpu_custom_call.1} parent=1 // pred_region
      _
    $region13: #{tpu_custom_call.1} parent=1 // pred_fallthru
      _
    %v16 = vld [vmem:[%s0] sm:$0xff]
    %v17 = vld [vmem:[%s0 + $0x8] sm:$0xff]
    %v18 = vld [vmem:[%s0 + $0x10] sm:$0xff]
    %v19 = vld [vmem:[%s0 + $0x18] sm:$0xff]
    %v20 = vld [vmem:[%s0 + $0x20] sm:$0xff]
    %v21 = vld [vmem:[%s0 + $0x28] sm:$0xff]
    %v22 = vld [vmem:[%s0 + $0x30] sm:$0xff]
    %v23 = vld [vmem:[%s0 + $0x38] sm:$0xff]
    %v24 = vld [vmem:[%s0 + $0x40] sm:$0xff]
    %v25 = vld [vmem:[%s0 + $0x48] sm:$0xff]
    %v26 = vld [vmem:[%s0 + $0x50] sm:$0xff]
    %v27 = vld [vmem:[%s0 + $0x58] sm:$0xff]
    %v28 = vld [vmem:[%s0 + $0x60] sm:$0xff]
    %v29 = vld [vmem:[%s0 + $0x68] sm:$0xff]
    %v30 = vld [vmem:[%s0 + $0x70] sm:$0xff]
    %v31 = vld [vmem:[%s0 + $0x78] sm:$0xff]
    %v32 = vld [vmem:[%s0 + $0x80] sm:$0xff]
    %v33 = vld [vmem:[%s0 + $0x88] sm:$0xff]
    %v34 = vld [vmem:[%s0 + $0x90] sm:$0xff]
    %v35 = vld [vmem:[%s0 + $0x98] sm:$0xff]
    %v36 = vld [vmem:[%s0 + $0xa0] sm:$0xff]
    %v37 = vld [vmem:[%s0 + $0xa8] sm:$0xff]
    %v38 = vld [vmem:[%s0 + $0xb0] sm:$0xff]
    %v39 = vld [vmem:[%s0 + $0xb8] sm:$0xff]
    %v40 = vld [vmem:[%s0 + $0xc0] sm:$0xff]
    %v41 = vld [vmem:[%s0 + $0xc8] sm:$0xff]
    %v42 = vld [vmem:[%s0 + $0xd0] sm:$0xff]
    %v43 = vld [vmem:[%s0 + $0xd8] sm:$0xff]
    %v44 = vld [vmem:[%s0 + $0xe0] sm:$0xff]
    %v45 = vld [vmem:[%s0 + $0xe8] sm:$0xff]
    %v46 = vld [vmem:[%s0 + $0xf0] sm:$0xff]
    %v47 = vld [vmem:[%s0 + $0xf8] sm:$0xff]
    %v48 = vld [vmem:[%s0 + $0x100] sm:$0xff]
    %v49 = vld [vmem:[%s0 + $0x108] sm:$0xff]
    %v50 = vld [vmem:[%s0 + $0x110] sm:$0xff]
    %v51 = vld [vmem:[%s0 + $0x118] sm:$0xff]
    %v52 = vld [vmem:[%s0 + $0x120] sm:$0xff]
    %v53 = vld [vmem:[%s0 + $0x128] sm:$0xff]
    %v54 = vld [vmem:[%s0 + $0x130] sm:$0xff]
    %v55 = vld [vmem:[%s0 + $0x138] sm:$0xff]
    %v56 = vld [vmem:[%s0 + $0x140] sm:$0xff]
    %v57 = vld [vmem:[%s0 + $0x148] sm:$0xff]
    %v58 = vld [vmem:[%s0 + $0x150] sm:$0xff]
    %v59 = vld [vmem:[%s0 + $0x158] sm:$0xff]
    %v60 = vld [vmem:[%s0 + $0x160] sm:$0xff]
    %v61 = vld [vmem:[%s0 + $0x168] sm:$0xff]
    %v62 = vld [vmem:[%s0 + $0x170] sm:$0xff]
    %v63 = vld [vmem:[%s0 + $0x178] sm:$0xff]
    %v64 = vld [vmem:[%s0 + $0x180] sm:$0xff]
    %v65 = vld [vmem:[%s0 + $0x188] sm:$0xff]
    %v66 = vld [vmem:[%s0 + $0x190] sm:$0xff]
    %v67 = vld [vmem:[%s0 + $0x198] sm:$0xff]
    %v68 = vld [vmem:[%s0 + $0x1a0] sm:$0xff]
    %v69 = vld [vmem:[%s0 + $0x1a8] sm:$0xff]
    %v70 = vld [vmem:[%s0 + $0x1b0] sm:$0xff]
    %v71 = vld [vmem:[%s0 + $0x1b8] sm:$0xff]
    %v72 = vld [vmem:[%s0 + $0x1c0] sm:$0xff]
    %v73 = vld [vmem:[%s0 + $0x1c8] sm:$0xff]
    %v74 = vld [vmem:[%s0 + $0x1d0] sm:$0xff]
    %v75 = vld [vmem:[%s0 + $0x1d8] sm:$0xff]
    %v76 = vld [vmem:[%s0 + $0x1e0] sm:$0xff]
    %v77 = vld [vmem:[%s0 + $0x1e8] sm:$0xff]
    %v78 = vld [vmem:[%s0 + $0x1f0] sm:$0xff]
    %v79 = vld [vmem:[%s0 + $0x1f8] sm:$0xff]
    %v80 = vld [vmem:[%s0 + $0x200] sm:$0xff]
    %v81 = vld [vmem:[%s0 + $0x208] sm:$0xff]
    %v82 = vld [vmem:[%s0 + $0x210] sm:$0xff]
    %v83 = vld [vmem:[%s0 + $0x218] sm:$0xff]
    %v84 = vld [vmem:[%s0 + $0x220] sm:$0xff]
    %v85 = vld [vmem:[%s0 + $0x228] sm:$0xff]
    %v86 = vld [vmem:[%s0 + $0x230] sm:$0xff]
    %v87 = vld [vmem:[%s0 + $0x238] sm:$0xff]
    %v88 = vld [vmem:[%s0 + $0x240] sm:$0xff]
    %v89 = vld [vmem:[%s0 + $0x248] sm:$0xff]
    %v90 = vld [vmem:[%s0 + $0x250] sm:$0xff]
    %v91 = vld [vmem:[%s0 + $0x258] sm:$0xff]
    %v92 = vld [vmem:[%s0 + $0x260] sm:$0xff]
    %v93 = vld [vmem:[%s0 + $0x268] sm:$0xff]
    %v94 = vld [vmem:[%s0 + $0x270] sm:$0xff]
    %v95 = vld [vmem:[%s0 + $0x278] sm:$0xff]
    %v96 = vld [vmem:[%s0 + $0x280] sm:$0xff]
    %v97 = vld [vmem:[%s0 + $0x288] sm:$0xff]
    %v98 = vld [vmem:[%s0 + $0x290] sm:$0xff]
    %v99 = vld [vmem:[%s0 + $0x298] sm:$0xff]
    %v100 = vld [vmem:[%s0 + $0x2a0] sm:$0xff]
    %v101 = vld [vmem:[%s0 + $0x2a8] sm:$0xff]
    %v102 = vld [vmem:[%s0 + $0x2b0] sm:$0xff]
    %v103 = vld [vmem:[%s0 + $0x2b8] sm:$0xff]
    %v104 = vld [vmem:[%s0 + $0x2c0] sm:$0xff]
    %v105 = vld [vmem:[%s0 + $0x2c8] sm:$0xff]
    %v106 = vld [vmem:[%s0 + $0x2d0] sm:$0xff]
    %v107 = vld [vmem:[%s0 + $0x2d8] sm:$0xff]
    %v108 = vld [vmem:[%s0 + $0x2e0] sm:$0xff]
    %v109 = vld [vmem:[%s0 + $0x2e8] sm:$0xff]
    %v110 = vld [vmem:[%s0 + $0x2f0] sm:$0xff]
    %v111 = vld [vmem:[%s0 + $0x2f8] sm:$0xff]
    %v112 = vld [vmem:[%s0 + $0x300] sm:$0xff]
    %v113 = vld [vmem:[%s0 + $0x308] sm:$0xff]
    %v114 = vld [vmem:[%s0 + $0x310] sm:$0xff]
    %v115 = vld [vmem:[%s0 + $0x318] sm:$0xff]
    %v116 = vld [vmem:[%s0 + $0x320] sm:$0xff]
    %v117 = vld [vmem:[%s0 + $0x328] sm:$0xff]
    %v118 = vld [vmem:[%s0 + $0x330] sm:$0xff]
    %v119 = vld [vmem:[%s0 + $0x338] sm:$0xff]
    %v120 = vld [vmem:[%s0 + $0x340] sm:$0xff]
    %v121 = vld [vmem:[%s0 + $0x348] sm:$0xff]
    %v122 = vld [vmem:[%s0 + $0x350] sm:$0xff]
    %v123 = vld [vmem:[%s0 + $0x358] sm:$0xff]
    %v124 = vld [vmem:[%s0 + $0x360] sm:$0xff]
    %v125 = vld [vmem:[%s0 + $0x368] sm:$0xff]
    %v126 = vld [vmem:[%s0 + $0x370] sm:$0xff]
    %v127 = vld [vmem:[%s0 + $0x378] sm:$0xff]
    %v128 = vpack.c.bf16 %v23, %v16
    %v129 = vpack.c.bf16 %v24, %v17
    %v130 = vpack.c.bf16 %v25, %v18
    %v131 = vpack.c.bf16 %v26, %v19
    %v132 = vpack.c.bf16 %v27, %v20
    %v133 = vpack.c.bf16 %v28, %v21
    %v134 = vpack.c.bf16 %v29, %v22
    %v135 = vpack.c.bf16 %v37, %v30
    %v136 = vpack.c.bf16 %v38, %v31
    %v137 = vpack.c.bf16 %v39, %v32
    %v138 = vpack.c.bf16 %v40, %v33
    %v139 = vpack.c.bf16 %v41, %v34
    %v140 = vpack.c.bf16 %v42, %v35
    %v141 = vpack.c.bf16 %v43, %v36
    %v142 = vpack.c.bf16 %v51, %v44
    %v143 = vpack.c.bf16 %v52, %v45
    %v144 = vpack.c.bf16 %v53, %v46
    %v145 = vpack.c.bf16 %v54, %v47
    %v146 = vpack.c.bf16 %v55, %v48
    %v147 = vpack.c.bf16 %v56, %v49
    %v148 = vpack.c.bf16 %v57, %v50
    %v149 = vpack.c.bf16 %v65, %v58
    %v150 = vpack.c.bf16 %v66, %v59
    %v151 = vpack.c.bf16 %v67, %v60
    %v152 = vpack.c.bf16 %v68, %v61
    %v153 = vpack.c.bf16 %v69, %v62
    %v154 = vpack.c.bf16 %v70, %v63
    %v155 = vpack.c.bf16 %v71, %v64
    %v156 = vpack.c.bf16 %v79, %v72
    %v157 = vpack.c.bf16 %v80, %v73
    %v158 = vpack.c.bf16 %v81, %v74
    %v159 = vpack.c.bf16 %v82, %v75
    %v160 = vpack.c.bf16 %v83, %v76
    %v161 = vpack.c.bf16 %v84, %v77
    %v162 = vpack.c.bf16 %v85, %v78
    %v163 = vpack.c.bf16 %v93, %v86
    %v164 = vpack.c.bf16 %v94, %v87
    %v165 = vpack.c.bf16 %v95, %v88
    %v166 = vpack.c.bf16 %v96, %v89
    %v167 = vpack.c.bf16 %v97, %v90
    %v168 = vpack.c.bf16 %v98, %v91
    %v169 = vpack.c.bf16 %v99, %v92
    %v170 = vpack.c.bf16 %v107, %v100
    %v171 = vpack.c.bf16 %v108, %v101
    %v172 = vpack.c.bf16 %v109, %v102
    %v173 = vpack.c.bf16 %v110, %v103
    %v174 = vpack.c.bf16 %v111, %v104
    %v175 = vpack.c.bf16 %v112, %v105
    %v176 = vpack.c.bf16 %v113, %v106
    %v177 = vpack.c.bf16 %v121, %v114
    %v178 = vpack.c.bf16 %v122, %v115
    %v179 = vpack.c.bf16 %v123, %v116
    %v180 = vpack.c.bf16 %v124, %v117
    %v181 = vpack.c.bf16 %v125, %v118
    %v182 = vpack.c.bf16 %v126, %v119
    %v183 = vpack.c.bf16 %v127, %v120
    %v184 = vld [vmem:[%s1] sm:$0xf]
    %v185 = vld [vmem:[%s1 + $0x4] sm:$0xf]
    %v186 = vld [vmem:[%s1 + $0x8] sm:$0xf]
    %v187 = vld [vmem:[%s1 + $0xc] sm:$0xf]
    %v188 = vld [vmem:[%s1 + $0x10] sm:$0xf]
    %v189 = vld [vmem:[%s1 + $0x14] sm:$0xf]
    %v190 = vld [vmem:[%s1 + $0x18] sm:$0xf]
    %v191 = vld [vmem:[%s1 + $0x1c] sm:$0xf]
    %v192 = vld [vmem:[%s1 + $0x20] sm:$0xf]
    %v193 = vld [vmem:[%s1 + $0x24] sm:$0xf]
    %v194 = vld [vmem:[%s1 + $0x28] sm:$0xf]
    %v195 = vld [vmem:[%s1 + $0x2c] sm:$0xf]
    %v196 = vld [vmem:[%s1 + $0x30] sm:$0xf]
    %v197 = vld [vmem:[%s1 + $0x34] sm:$0xf]
    %v198 = vld [vmem:[%s1 + $0x38] sm:$0xf]
    %v199 = vld [vmem:[%s1 + $0x3c] sm:$0xf]
    %v200 = vld [vmem:[%s1 + $0x40] sm:$0xf]
    %v201 = vld [vmem:[%s1 + $0x44] sm:$0xf]
    %v202 = vld [vmem:[%s1 + $0x48] sm:$0xf]
    %v203 = vld [vmem:[%s1 + $0x4c] sm:$0xf]
    %v204 = vld [vmem:[%s1 + $0x50] sm:$0xf]
    %v205 = vld [vmem:[%s1 + $0x54] sm:$0xf]
    %v206 = vld [vmem:[%s1 + $0x58] sm:$0xf]
    %v207 = vld [vmem:[%s1 + $0x5c] sm:$0xf]
    %v208 = vld [vmem:[%s1 + $0x60] sm:$0xf]
    %v209 = vld [vmem:[%s1 + $0x64] sm:$0xf]
    %v210 = vld [vmem:[%s1 + $0x68] sm:$0xf]
    %v211 = vld [vmem:[%s1 + $0x6c] sm:$0xf]
    %v212 = vld [vmem:[%s1 + $0x70] sm:$0xf]
    %v213 = vld [vmem:[%s1 + $0x74] sm:$0xf]
    %v214 = vld [vmem:[%s1 + $0x78] sm:$0xf]
    %v215 = vld [vmem:[%s1 + $0x7c] sm:$0xf]
    %v216 = vld [vmem:[%s1 + $0x80] sm:$0xf]
    %v217 = vld [vmem:[%s1 + $0x84] sm:$0xf]
    %v218 = vld [vmem:[%s1 + $0x88] sm:$0xf]
    %v219 = vld [vmem:[%s1 + $0x8c] sm:$0xf]
    %v220 = vld [vmem:[%s1 + $0x90] sm:$0xf]
    %v221 = vld [vmem:[%s1 + $0x94] sm:$0xf]
    %v222 = vld [vmem:[%s1 + $0x98] sm:$0xf]
    %v223 = vld [vmem:[%s1 + $0x9c] sm:$0xf]
    %v224 = vld [vmem:[%s1 + $0xa0] sm:$0xf]
    %v225 = vld [vmem:[%s1 + $0xa4] sm:$0xf]
    %v226 = vld [vmem:[%s1 + $0xa8] sm:$0xf]
    %v227 = vld [vmem:[%s1 + $0xac] sm:$0xf]
    %v228 = vld [vmem:[%s1 + $0xb0] sm:$0xf]
    %v229 = vld [vmem:[%s1 + $0xb4] sm:$0xf]
    %v230 = vld [vmem:[%s1 + $0xb8] sm:$0xf]
    %v231 = vld [vmem:[%s1 + $0xbc] sm:$0xf]
    %v232 = vld [vmem:[%s1 + $0xc0] sm:$0xf]
    %v233 = vld [vmem:[%s1 + $0xc4] sm:$0xf]
    %v234 = vld [vmem:[%s1 + $0xc8] sm:$0xf]
    %v235 = vld [vmem:[%s1 + $0xcc] sm:$0xf]
    %v236 = vld [vmem:[%s1 + $0xd0] sm:$0xf]
    %v237 = vld [vmem:[%s1 + $0xd4] sm:$0xf]
    %v238 = vld [vmem:[%s1 + $0xd8] sm:$0xf]
    %v239 = vld [vmem:[%s1 + $0xdc] sm:$0xf]
    %v240 = vld [vmem:[%s1 + $0xe0] sm:$0xf]
    %v241 = vld [vmem:[%s1 + $0xe4] sm:$0xf]
    %v242 = vld [vmem:[%s1 + $0xe8] sm:$0xf]
    %v243 = vld [vmem:[%s1 + $0xec] sm:$0xf]
    %v244 = vld [vmem:[%s1 + $0xf0] sm:$0xf]
    %v245 = vld [vmem:[%s1 + $0xf4] sm:$0xf]
    %v246 = vld [vmem:[%s1 + $0xf8] sm:$0xf]
    %v247 = vld [vmem:[%s1 + $0xfc] sm:$0xf]
    %v248 = vld [vmem:[%s1 + $0x100] sm:$0xf]
    %v249 = vld [vmem:[%s1 + $0x104] sm:$0xf]
    %v250 = vld [vmem:[%s1 + $0x108] sm:$0xf]
    %v251 = vld [vmem:[%s1 + $0x10c] sm:$0xf]
    %v252 = vld [vmem:[%s1 + $0x110] sm:$0xf]
    %v253 = vld [vmem:[%s1 + $0x114] sm:$0xf]
    %v254 = vld [vmem:[%s1 + $0x118] sm:$0xf]
    %v255 = vld [vmem:[%s1 + $0x11c] sm:$0xf]
    %v256 = vld [vmem:[%s1 + $0x120] sm:$0xf]
    %v257 = vld [vmem:[%s1 + $0x124] sm:$0xf]
    %v258 = vld [vmem:[%s1 + $0x128] sm:$0xf]
    %v259 = vld [vmem:[%s1 + $0x12c] sm:$0xf]
    %v260 = vld [vmem:[%s1 + $0x130] sm:$0xf]
    %v261 = vld [vmem:[%s1 + $0x134] sm:$0xf]
    %v262 = vld [vmem:[%s1 + $0x138] sm:$0xf]
    %v263 = vld [vmem:[%s1 + $0x13c] sm:$0xf]
    %v264 = vld [vmem:[%s1 + $0x140] sm:$0xf]
    %v265 = vld [vmem:[%s1 + $0x144] sm:$0xf]
    %v266 = vld [vmem:[%s1 + $0x148] sm:$0xf]
    %v267 = vld [vmem:[%s1 + $0x14c] sm:$0xf]
    %v268 = vld [vmem:[%s1 + $0x150] sm:$0xf]
    %v269 = vld [vmem:[%s1 + $0x154] sm:$0xf]
    %v270 = vld [vmem:[%s1 + $0x158] sm:$0xf]
    %v271 = vld [vmem:[%s1 + $0x15c] sm:$0xf]
    %v272 = vld [vmem:[%s1 + $0x160] sm:$0xf]
    %v273 = vld [vmem:[%s1 + $0x164] sm:$0xf]
    %v274 = vld [vmem:[%s1 + $0x168] sm:$0xf]
    %v275 = vld [vmem:[%s1 + $0x16c] sm:$0xf]
    %v276 = vld [vmem:[%s1 + $0x170] sm:$0xf]
    %v277 = vld [vmem:[%s1 + $0x174] sm:$0xf]
    %v278 = vld [vmem:[%s1 + $0x178] sm:$0xf]
    %v279 = vld [vmem:[%s1 + $0x17c] sm:$0xf]
    %v280 = vld [vmem:[%s1 + $0x180] sm:$0xf]
    %v281 = vld [vmem:[%s1 + $0x184] sm:$0xf]
    %v282 = vld [vmem:[%s2] sm:$0x1]
    %v284 = vperm.slane %v282, 0
    %v384 = vunpack.c.l.b16 %v184
    %v385 = vunpack.c.l.b16 %v185
    %v386 = vunpack.c.l.b16 %v186
    %v387 = vunpack.c.l.b16 %v187
    %v388 = vunpack.c.l.b16 %v188
    %v389 = vunpack.c.l.b16 %v189
    %v390 = vunpack.c.l.b16 %v190
    %v391 = vunpack.c.l.b16 %v191
    %v392 = vunpack.c.l.b16 %v192
    %v393 = vunpack.c.l.b16 %v193
    %v394 = vunpack.c.l.b16 %v194
    %v395 = vunpack.c.l.b16 %v195
    %v396 = vunpack.c.l.b16 %v196
    %v397 = vunpack.c.l.b16 %v197
    %v398 = vunpack.c.l.b16 %v198
    %v399 = vunpack.c.l.b16 %v199
    %v400 = vunpack.c.l.b16 %v200
    %v401 = vunpack.c.l.b16 %v201
    %v402 = vunpack.c.l.b16 %v202
    %v403 = vunpack.c.l.b16 %v203
    %v404 = vunpack.c.l.b16 %v204
    %v405 = vunpack.c.l.b16 %v205
    %v406 = vunpack.c.l.b16 %v206
    %v407 = vunpack.c.l.b16 %v207
    %v408 = vunpack.c.l.b16 %v208
    %v409 = vunpack.c.l.b16 %v209
    %v410 = vunpack.c.l.b16 %v210
    %v411 = vunpack.c.l.b16 %v211
    %v412 = vunpack.c.l.b16 %v212
    %v413 = vunpack.c.l.b16 %v213
    %v414 = vunpack.c.l.b16 %v214
    %v415 = vunpack.c.l.b16 %v215
    %v416 = vunpack.c.l.b16 %v216
    %v417 = vunpack.c.l.b16 %v217
    %v418 = vunpack.c.l.b16 %v218
    %v419 = vunpack.c.l.b16 %v219
    %v420 = vunpack.c.l.b16 %v220
    %v421 = vunpack.c.l.b16 %v221
    %v422 = vunpack.c.l.b16 %v222
    %v423 = vunpack.c.l.b16 %v223
    %v424 = vunpack.c.l.b16 %v224
    %v425 = vunpack.c.l.b16 %v225
    %v426 = vunpack.c.l.b16 %v226
    %v427 = vunpack.c.l.b16 %v227
    %v428 = vunpack.c.l.b16 %v228
    %v429 = vunpack.c.l.b16 %v229
    %v430 = vunpack.c.l.b16 %v230
    %v431 = vunpack.c.l.b16 %v231
    %v432 = vunpack.c.l.b16 %v232
    %v433 = vunpack.c.l.b16 %v233
    %v434 = vunpack.c.l.b16 %v234
    %v435 = vunpack.c.l.b16 %v235
    %v436 = vunpack.c.l.b16 %v236
    %v437 = vunpack.c.l.b16 %v237
    %v438 = vunpack.c.l.b16 %v238
    %v439 = vunpack.c.l.b16 %v239
    %v440 = vunpack.c.l.b16 %v240
    %v441 = vunpack.c.l.b16 %v241
    %v442 = vunpack.c.l.b16 %v242
    %v443 = vunpack.c.l.b16 %v243
    %v444 = vunpack.c.l.b16 %v244
    %v445 = vunpack.c.l.b16 %v245
    %v446 = vunpack.c.l.b16 %v246
    %v447 = vunpack.c.l.b16 %v247
    %v448 = vunpack.c.l.b16 %v248
    %v449 = vunpack.c.l.b16 %v249
    %v450 = vunpack.c.l.b16 %v250
    %v451 = vunpack.c.l.b16 %v251
    %v452 = vunpack.c.l.b16 %v252
    %v453 = vunpack.c.l.b16 %v253
    %v454 = vunpack.c.l.b16 %v254
    %v455 = vunpack.c.l.b16 %v255
    %v456 = vunpack.c.l.b16 %v256
    %v457 = vunpack.c.l.b16 %v257
    %v458 = vunpack.c.l.b16 %v258
    %v459 = vunpack.c.l.b16 %v259
    %v460 = vunpack.c.l.b16 %v260
    %v461 = vunpack.c.l.b16 %v261
    %v462 = vunpack.c.l.b16 %v262
    %v463 = vunpack.c.l.b16 %v263
    %v464 = vunpack.c.l.b16 %v264
    %v465 = vunpack.c.l.b16 %v265
    %v466 = vunpack.c.l.b16 %v266
    %v467 = vunpack.c.l.b16 %v267
    %v468 = vunpack.c.l.b16 %v268
    %v469 = vunpack.c.l.b16 %v269
    %v470 = vunpack.c.l.b16 %v270
    %v471 = vunpack.c.l.b16 %v271
    %v472 = vunpack.c.l.b16 %v272
    %v473 = vunpack.c.l.b16 %v273
    %v474 = vunpack.c.l.b16 %v274
    %v475 = vunpack.c.l.b16 %v275
    %v476 = vunpack.c.l.b16 %v276
    %v477 = vunpack.c.l.b16 %v277
    %v478 = vunpack.c.l.b16 %v278
    %v479 = vunpack.c.l.b16 %v279
    %v480 = vunpack.c.l.b16 %v280
    %v481 = vunpack.c.l.b16 %v281
    %v482 = vpack.c.b16 %v385, %v384
    %v483 = vpack.c.b16 %v387, %v386
    %v484 = vpack.c.b16 %v389, %v388
    %v485 = vpack.c.b16 %v391, %v390
    %v486 = vpack.c.b16 %v393, %v392
    %v487 = vpack.c.b16 %v395, %v394
    %v488 = vpack.c.b16 %v397, %v396
    %v489 = vpack.c.b16 %v399, %v398
    %v490 = vpack.c.b16 %v401, %v400
    %v491 = vpack.c.b16 %v403, %v402
    %v492 = vpack.c.b16 %v405, %v404
    %v493 = vpack.c.b16 %v407, %v406
    %v494 = vpack.c.b16 %v409, %v408
    %v495 = vpack.c.b16 %v411, %v410
    %v496 = vpack.c.b16 %v413, %v412
    %v497 = vpack.c.b16 %v415, %v414
    %v498 = vpack.c.b16 %v417, %v416
    %v499 = vpack.c.b16 %v419, %v418
    %v500 = vpack.c.b16 %v421, %v420
    %v501 = vpack.c.b16 %v423, %v422
    %v502 = vpack.c.b16 %v425, %v424
    %v503 = vpack.c.b16 %v427, %v426
    %v504 = vpack.c.b16 %v429, %v428
    %v505 = vpack.c.b16 %v431, %v430
    %v506 = vpack.c.b16 %v433, %v432
    %v507 = vpack.c.b16 %v435, %v434
    %v508 = vpack.c.b16 %v437, %v436
    %v509 = vpack.c.b16 %v439, %v438
    %v510 = vpack.c.b16 %v441, %v440
    %v511 = vpack.c.b16 %v443, %v442
    %v512 = vpack.c.b16 %v445, %v444
    %v513 = vpack.c.b16 %v447, %v446
    %v514 = vpack.c.b16 %v449, %v448
    %v515 = vpack.c.b16 %v451, %v450
    %v516 = vpack.c.b16 %v453, %v452
    %v517 = vpack.c.b16 %v455, %v454
    %v518 = vpack.c.b16 %v457, %v456
    %v519 = vpack.c.b16 %v459, %v458
    %v520 = vpack.c.b16 %v461, %v460
    %v521 = vpack.c.b16 %v463, %v462
    %v522 = vpack.c.b16 %v465, %v464
    %v523 = vpack.c.b16 %v467, %v466
    %v524 = vpack.c.b16 %v469, %v468
    %v525 = vpack.c.b16 %v471, %v470
    %v526 = vpack.c.b16 %v473, %v472
    %v527 = vpack.c.b16 %v475, %v474
    %v528 = vpack.c.b16 %v477, %v476
    %v529 = vpack.c.b16 %v479, %v478
    %v530 = vpack.c.b16 %v481, %v480
    %vm580 = vcmask 130048
    %v582 = vsel %vm580, %v134, 0
    %v585 = vsel %vm580, %v141, 0
    %v588 = vsel %vm580, %v148, 0
    %v591 = vsel %vm580, %v155, 0
    %v594 = vsel %vm580, %v162, 0
    %v597 = vsel %vm580, %v169, 0
    %v600 = vsel %vm580, %v176, 0
    %v603 = vsel %vm580, %v183, 0
    %605 = vmatpush.bf16.msra.mxu0 %v489
    %606 = vmatpush.bf16.msra.mxu0 %v488
    %607 = vmatpush.bf16.msra.mxu0 %v487
    %608 = vmatpush.bf16.msra.mxu0 %v486
    %609 = vmatpush.bf16.msra.mxu0 %v485
    %610 = vmatpush.bf16.msra.mxu0 %v484
    %611 = vmatpush.bf16.msra.mxu0 %v483
    %612 = vmatpush.bf16.msra.mxu0 %v482
    %613 = vmatmul.bf16.gmra.mxu0 %v128
    %v614 = vpop.f32.mrf.mxu0
    %v615 = vadd.f32 %v284, %v614
    %v616 = vpop.f32.mrf.mxu0
    %v617 = vadd.f32 %v284, %v616
    %618 = vmatmul.bf16.gmra.mxu0 %v135
    %v619 = vpop.f32.mrf.mxu0
    %v620 = vadd.f32 %v284, %v619
    %v621 = vpop.f32.mrf.mxu0
    %v622 = vadd.f32 %v284, %v621
    %623 = vmatmul.bf16.gmra.mxu0 %v142
    %v624 = vpop.f32.mrf.mxu0
    %v625 = vadd.f32 %v284, %v624
    %v626 = vpop.f32.mrf.mxu0
    %v627 = vadd.f32 %v284, %v626
    %628 = vmatmul.bf16.gmra.mxu0 %v149
    %v629 = vpop.f32.mrf.mxu0
    %v630 = vadd.f32 %v284, %v629
    %v631 = vpop.f32.mrf.mxu0
    %v632 = vadd.f32 %v284, %v631
    %633 = vmatmul.bf16.gmra.mxu0 %v156
    %v634 = vpop.f32.mrf.mxu0
    %v635 = vadd.f32 %v284, %v634
    %v636 = vpop.f32.mrf.mxu0
    %v637 = vadd.f32 %v284, %v636
    %638 = vmatmul.bf16.gmra.mxu0 %v163
    %v639 = vpop.f32.mrf.mxu0
    %v640 = vadd.f32 %v284, %v639
    %v641 = vpop.f32.mrf.mxu0
    %v642 = vadd.f32 %v284, %v641
    %643 = vmatmul.bf16.gmra.mxu0 %v170
    %v644 = vpop.f32.mrf.mxu0
    %v645 = vadd.f32 %v284, %v644
    %v646 = vpop.f32.mrf.mxu0
    %v647 = vadd.f32 %v284, %v646
    %648 = vmatmul.bf16.gmra.mxu0 %v177
    %v649 = vpop.f32.mrf.mxu0
    %v650 = vadd.f32 %v284, %v649
    %v651 = vpop.f32.mrf.mxu0
    %v652 = vadd.f32 %v284, %v651
    %653 = vdwg.mxu0
    %654 = vmatpush.bf16.msra.mxu0 %v497
    %655 = vmatpush.bf16.msra.mxu0 %v496
    %656 = vmatpush.bf16.msra.mxu0 %v495
    %657 = vmatpush.bf16.msra.mxu0 %v494
    %658 = vmatpush.bf16.msra.mxu0 %v493
    %659 = vmatpush.bf16.msra.mxu0 %v492
    %660 = vmatpush.bf16.msra.mxu0 %v491
    %661 = vmatpush.bf16.msra.mxu0 %v490
    %662 = vmatmul.bf16.gmra.mxu0 %v129
    %v663 = vpop.f32.mrf.mxu0
    %v664 = vadd.f32 %v615, %v663
    %v665 = vpop.f32.mrf.mxu0
    %v666 = vadd.f32 %v617, %v665
    %667 = vmatmul.bf16.gmra.mxu0 %v136
    %v668 = vpop.f32.mrf.mxu0
    %v669 = vadd.f32 %v620, %v668
    %v670 = vpop.f32.mrf.mxu0
    %v671 = vadd.f32 %v622, %v670
    %672 = vmatmul.bf16.gmra.mxu0 %v143
    %v673 = vpop.f32.mrf.mxu0
    %v674 = vadd.f32 %v625, %v673
    %v675 = vpop.f32.mrf.mxu0
    %v676 = vadd.f32 %v627, %v675
    %677 = vmatmul.bf16.gmra.mxu0 %v150
    %v678 = vpop.f32.mrf.mxu0
    %v679 = vadd.f32 %v630, %v678
    %v680 = vpop.f32.mrf.mxu0
    %v681 = vadd.f32 %v632, %v680
    %682 = vmatmul.bf16.gmra.mxu0 %v157
    %v683 = vpop.f32.mrf.mxu0
    %v684 = vadd.f32 %v635, %v683
    %v685 = vpop.f32.mrf.mxu0
    %v686 = vadd.f32 %v637, %v685
    %687 = vmatmul.bf16.gmra.mxu0 %v164
    %v688 = vpop.f32.mrf.mxu0
    %v689 = vadd.f32 %v640, %v688
    %v690 = vpop.f32.mrf.mxu0
    %v691 = vadd.f32 %v642, %v690
    %692 = vmatmul.bf16.gmra.mxu0 %v171
    %v693 = vpop.f32.mrf.mxu0
    %v694 = vadd.f32 %v645, %v693
    %v695 = vpop.f32.mrf.mxu0
    %v696 = vadd.f32 %v647, %v695
    %697 = vmatmul.bf16.gmra.mxu0 %v178
    %v698 = vpop.f32.mrf.mxu0
    %v699 = vadd.f32 %v650, %v698
    %v700 = vpop.f32.mrf.mxu0
    %v701 = vadd.f32 %v652, %v700
    %702 = vdwg.mxu0
    %703 = vmatpush.bf16.msra.mxu0 %v505
    %704 = vmatpush.bf16.msra.mxu0 %v504
    %705 = vmatpush.bf16.msra.mxu0 %v503
    %706 = vmatpush.bf16.msra.mxu0 %v502
    %707 = vmatpush.bf16.msra.mxu0 %v501
    %708 = vmatpush.bf16.msra.mxu0 %v500
    %709 = vmatpush.bf16.msra.mxu0 %v499
    %710 = vmatpush.bf16.msra.mxu0 %v498
    %711 = vmatmul.bf16.gmra.mxu0 %v130
    %v712 = vpop.f32.mrf.mxu0
    %v713 = vadd.f32 %v664, %v712
    %v714 = vpop.f32.mrf.mxu0
    %v715 = vadd.f32 %v666, %v714
    %716 = vmatmul.bf16.gmra.mxu0 %v137
    %v717 = vpop.f32.mrf.mxu0
    %v718 = vadd.f32 %v669, %v717
    %v719 = vpop.f32.mrf.mxu0
    %v720 = vadd.f32 %v671, %v719
    %721 = vmatmul.bf16.gmra.mxu0 %v144
    %v722 = vpop.f32.mrf.mxu0
    %v723 = vadd.f32 %v674, %v722
    %v724 = vpop.f32.mrf.mxu0
    %v725 = vadd.f32 %v676, %v724
    %726 = vmatmul.bf16.gmra.mxu0 %v151
    %v727 = vpop.f32.mrf.mxu0
    %v728 = vadd.f32 %v679, %v727
    %v729 = vpop.f32.mrf.mxu0
    %v730 = vadd.f32 %v681, %v729
    %731 = vmatmul.bf16.gmra.mxu0 %v158
    %v732 = vpop.f32.mrf.mxu0
    %v733 = vadd.f32 %v684, %v732
    %v734 = vpop.f32.mrf.mxu0
    %v735 = vadd.f32 %v686, %v734
    %736 = vmatmul.bf16.gmra.mxu0 %v165
    %v737 = vpop.f32.mrf.mxu0
    %v738 = vadd.f32 %v689, %v737
    %v739 = vpop.f32.mrf.mxu0
    %v740 = vadd.f32 %v691, %v739
    %741 = vmatmul.bf16.gmra.mxu0 %v172
    %v742 = vpop.f32.mrf.mxu0
    %v743 = vadd.f32 %v694, %v742
    %v744 = vpop.f32.mrf.mxu0
    %v745 = vadd.f32 %v696, %v744
    %746 = vmatmul.bf16.gmra.mxu0 %v179
    %v747 = vpop.f32.mrf.mxu0
    %v748 = vadd.f32 %v699, %v747
    %v749 = vpop.f32.mrf.mxu0
    %v750 = vadd.f32 %v701, %v749
    %751 = vdwg.mxu0
    %752 = vmatpush.bf16.msra.mxu0 %v513
    %753 = vmatpush.bf16.msra.mxu0 %v512
    %754 = vmatpush.bf16.msra.mxu0 %v511
    %755 = vmatpush.bf16.msra.mxu0 %v510
    %756 = vmatpush.bf16.msra.mxu0 %v509
    %757 = vmatpush.bf16.msra.mxu0 %v508
    %758 = vmatpush.bf16.msra.mxu0 %v507
    %759 = vmatpush.bf16.msra.mxu0 %v506
    %760 = vmatmul.bf16.gmra.mxu0 %v131
    %v761 = vpop.f32.mrf.mxu0
    %v762 = vadd.f32 %v713, %v761
    %v763 = vpop.f32.mrf.mxu0
    %v764 = vadd.f32 %v715, %v763
    %765 = vmatmul.bf16.gmra.mxu0 %v138
    %v766 = vpop.f32.mrf.mxu0
    %v767 = vadd.f32 %v718, %v766
    %v768 = vpop.f32.mrf.mxu0
    %v769 = vadd.f32 %v720, %v768
    %770 = vmatmul.bf16.gmra.mxu0 %v145
    %v771 = vpop.f32.mrf.mxu0
    %v772 = vadd.f32 %v723, %v771
    %v773 = vpop.f32.mrf.mxu0
    %v774 = vadd.f32 %v725, %v773
    %775 = vmatmul.bf16.gmra.mxu0 %v152
    %v776 = vpop.f32.mrf.mxu0
    %v777 = vadd.f32 %v728, %v776
    %v778 = vpop.f32.mrf.mxu0
    %v779 = vadd.f32 %v730, %v778
    %780 = vmatmul.bf16.gmra.mxu0 %v159
    %v781 = vpop.f32.mrf.mxu0
    %v782 = vadd.f32 %v733, %v781
    %v783 = vpop.f32.mrf.mxu0
    %v784 = vadd.f32 %v735, %v783
    %785 = vmatmul.bf16.gmra.mxu0 %v166
    %v786 = vpop.f32.mrf.mxu0
    %v787 = vadd.f32 %v738, %v786
    %v788 = vpop.f32.mrf.mxu0
    %v789 = vadd.f32 %v740, %v788
    %790 = vmatmul.bf16.gmra.mxu0 %v173
    %v791 = vpop.f32.mrf.mxu0
    %v792 = vadd.f32 %v743, %v791
    %v793 = vpop.f32.mrf.mxu0
    %v794 = vadd.f32 %v745, %v793
    %795 = vmatmul.bf16.gmra.mxu0 %v180
    %v796 = vpop.f32.mrf.mxu0
    %v797 = vadd.f32 %v748, %v796
    %v798 = vpop.f32.mrf.mxu0
    %v799 = vadd.f32 %v750, %v798
    %800 = vdwg.mxu0
    %801 = vmatpush.bf16.msra.mxu0 %v521
    %802 = vmatpush.bf16.msra.mxu0 %v520
    %803 = vmatpush.bf16.msra.mxu0 %v519
    %804 = vmatpush.bf16.msra.mxu0 %v518
    %805 = vmatpush.bf16.msra.mxu0 %v517
    %806 = vmatpush.bf16.msra.mxu0 %v516
    %807 = vmatpush.bf16.msra.mxu0 %v515
    %808 = vmatpush.bf16.msra.mxu0 %v514
    %809 = vmatmul.bf16.gmra.mxu0 %v132
    %v810 = vpop.f32.mrf.mxu0
    %v811 = vadd.f32 %v762, %v810
    %v812 = vpop.f32.mrf.mxu0
    %v813 = vadd.f32 %v764, %v812
    %814 = vmatmul.bf16.gmra.mxu0 %v139
    %v815 = vpop.f32.mrf.mxu0
    %v816 = vadd.f32 %v767, %v815
    %v817 = vpop.f32.mrf.mxu0
    %v818 = vadd.f32 %v769, %v817
    %819 = vmatmul.bf16.gmra.mxu0 %v146
    %v820 = vpop.f32.mrf.mxu0
    %v821 = vadd.f32 %v772, %v820
    %v822 = vpop.f32.mrf.mxu0
    %v823 = vadd.f32 %v774, %v822
    %824 = vmatmul.bf16.gmra.mxu0 %v153
    %v825 = vpop.f32.mrf.mxu0
    %v826 = vadd.f32 %v777, %v825
    %v827 = vpop.f32.mrf.mxu0
    %v828 = vadd.f32 %v779, %v827
    %829 = vmatmul.bf16.gmra.mxu0 %v160
    %v830 = vpop.f32.mrf.mxu0
    %v831 = vadd.f32 %v782, %v830
    %v832 = vpop.f32.mrf.mxu0
    %v833 = vadd.f32 %v784, %v832
    %834 = vmatmul.bf16.gmra.mxu0 %v167
    %v835 = vpop.f32.mrf.mxu0
    %v836 = vadd.f32 %v787, %v835
    %v837 = vpop.f32.mrf.mxu0
    %v838 = vadd.f32 %v789, %v837
    %839 = vmatmul.bf16.gmra.mxu0 %v174
    %v840 = vpop.f32.mrf.mxu0
    %v841 = vadd.f32 %v792, %v840
    %v842 = vpop.f32.mrf.mxu0
    %v843 = vadd.f32 %v794, %v842
    %844 = vmatmul.bf16.gmra.mxu0 %v181
    %v845 = vpop.f32.mrf.mxu0
    %v846 = vadd.f32 %v797, %v845
    %v847 = vpop.f32.mrf.mxu0
    %v848 = vadd.f32 %v799, %v847
    %849 = vdwg.mxu0
    %850 = vmatpush.bf16.msra.mxu0 %v529
    %851 = vmatpush.bf16.msra.mxu0 %v528
    %852 = vmatpush.bf16.msra.mxu0 %v527
    %853 = vmatpush.bf16.msra.mxu0 %v526
    %854 = vmatpush.bf16.msra.mxu0 %v525
    %855 = vmatpush.bf16.msra.mxu0 %v524
    %856 = vmatpush.bf16.msra.mxu0 %v523
    %857 = vmatpush.bf16.msra.mxu0 %v522
    %858 = vmatmul.bf16.gmra.mxu0 %v133
    %v859 = vpop.f32.mrf.mxu0
    %v860 = vadd.f32 %v811, %v859
    %v861 = vpop.f32.mrf.mxu0
    %v862 = vadd.f32 %v813, %v861
    %863 = vmatmul.bf16.gmra.mxu0 %v140
    %v864 = vpop.f32.mrf.mxu0
    %v865 = vadd.f32 %v816, %v864
    %v866 = vpop.f32.mrf.mxu0
    %v867 = vadd.f32 %v818, %v866
    %868 = vmatmul.bf16.gmra.mxu0 %v147
    %v869 = vpop.f32.mrf.mxu0
    %v870 = vadd.f32 %v821, %v869
    %v871 = vpop.f32.mrf.mxu0
    %v872 = vadd.f32 %v823, %v871
    %873 = vmatmul.bf16.gmra.mxu0 %v154
    %v874 = vpop.f32.mrf.mxu0
    %v875 = vadd.f32 %v826, %v874
    %v876 = vpop.f32.mrf.mxu0
    %v877 = vadd.f32 %v828, %v876
    %878 = vmatmul.bf16.gmra.mxu0 %v161
    %v879 = vpop.f32.mrf.mxu0
    %v880 = vadd.f32 %v831, %v879
    %v881 = vpop.f32.mrf.mxu0
    %v882 = vadd.f32 %v833, %v881
    %883 = vmatmul.bf16.gmra.mxu0 %v168
    %v884 = vpop.f32.mrf.mxu0
    %v885 = vadd.f32 %v836, %v884
    %v886 = vpop.f32.mrf.mxu0
    %v887 = vadd.f32 %v838, %v886
    %888 = vmatmul.bf16.gmra.mxu0 %v175
    %v889 = vpop.f32.mrf.mxu0
    %v890 = vadd.f32 %v841, %v889
    %v891 = vpop.f32.mrf.mxu0
    %v892 = vadd.f32 %v843, %v891
    %893 = vmatmul.bf16.gmra.mxu0 %v182
    %v894 = vpop.f32.mrf.mxu0
    %v895 = vadd.f32 %v846, %v894
    %v896 = vpop.f32.mrf.mxu0
    %v897 = vadd.f32 %v848, %v896
    %898 = vdwg.mxu0
    %899 = vmatpush.bf16.msra.mxu0 0
    %900 = vmatpush.bf16.msra.mxu0 0
    %901 = vmatpush.bf16.msra.mxu0 0
    %902 = vmatpush.bf16.msra.mxu0 0
    %903 = vmatpush.bf16.msra.mxu0 0
    %904 = vmatpush.bf16.msra.mxu0 0
    %905 = vmatpush.bf16.msra.mxu0 0
    %906 = vmatpush.bf16.msra.mxu0 %v530
    %907 = vmatmul.bf16.gmra.mxu0 %v582
    %v908 = vpop.f32.mrf.mxu0
    %v909 = vadd.f32 %v860, %v908
    %v910 = vpop.f32.mrf.mxu0
    %v911 = vadd.f32 %v862, %v910
    %912 = vmatmul.bf16.gmra.mxu0 %v585
    %v913 = vpop.f32.mrf.mxu0
    %v914 = vadd.f32 %v865, %v913
    %v915 = vpop.f32.mrf.mxu0
    %v916 = vadd.f32 %v867, %v915
    %917 = vmatmul.bf16.gmra.mxu0 %v588
    %v918 = vpop.f32.mrf.mxu0
    %v919 = vadd.f32 %v870, %v918
    %v920 = vpop.f32.mrf.mxu0
    %v921 = vadd.f32 %v872, %v920
    %922 = vmatmul.bf16.gmra.mxu0 %v591
    %v923 = vpop.f32.mrf.mxu0
    %v924 = vadd.f32 %v875, %v923
    %v925 = vpop.f32.mrf.mxu0
    %v926 = vadd.f32 %v877, %v925
    %927 = vmatmul.bf16.gmra.mxu0 %v594
    %v928 = vpop.f32.mrf.mxu0
    %v929 = vadd.f32 %v880, %v928
    %v930 = vpop.f32.mrf.mxu0
    %v931 = vadd.f32 %v882, %v930
    %932 = vmatmul.bf16.gmra.mxu0 %v597
    %v933 = vpop.f32.mrf.mxu0
    %v934 = vadd.f32 %v885, %v933
    %v935 = vpop.f32.mrf.mxu0
    %v936 = vadd.f32 %v887, %v935
    %937 = vmatmul.bf16.gmra.mxu0 %v600
    %v938 = vpop.f32.mrf.mxu0
    %v939 = vadd.f32 %v890, %v938
    %v940 = vpop.f32.mrf.mxu0
    %v941 = vadd.f32 %v892, %v940
    %942 = vmatmul.bf16.gmra.mxu0 %v603
    %v943 = vpop.f32.mrf.mxu0
    %v944 = vadd.f32 %v895, %v943
    %v945 = vpop.f32.mrf.mxu0
    %v946 = vadd.f32 %v897, %v945
    %947 = vdwg.mxu0
    %948 = vst [vmem:[#allocation2] sm:$0xff] %v909
    %949 = vst [vmem:[#allocation2 + $0x8] sm:$0xff] %v911
    %950 = vst [vmem:[#allocation2 + $0x10] sm:$0xff] %v914
    %951 = vst [vmem:[#allocation2 + $0x18] sm:$0xff] %v916
    %952 = vst [vmem:[#allocation2 + $0x20] sm:$0xff] %v919
    %953 = vst [vmem:[#allocation2 + $0x28] sm:$0xff] %v921
    %954 = vst [vmem:[#allocation2 + $0x30] sm:$0xff] %v924
    %955 = vst [vmem:[#allocation2 + $0x38] sm:$0xff] %v926
    %956 = vst [vmem:[#allocation2 + $0x40] sm:$0xff] %v929
    %957 = vst [vmem:[#allocation2 + $0x48] sm:$0xff] %v931
    %958 = vst [vmem:[#allocation2 + $0x50] sm:$0xff] %v934
    %959 = vst [vmem:[#allocation2 + $0x58] sm:$0xff] %v936
    %960 = vst [vmem:[#allocation2 + $0x60] sm:$0xff] %v939
    %961 = vst [vmem:[#allocation2 + $0x68] sm:$0xff] %v941
    %962 = vst [vmem:[#allocation2 + $0x70] sm:$0xff] %v944
    %963 = vst [vmem:[#allocation2 + $0x78] sm:$0xff] %v946
    // Predicated region
    $region14: #{tpu_custom_call.1} parent=1 // pred_check
      _
    $region15: #{tpu_custom_call.1} parent=1 // pred_check_branch
      %965 = sbr.rel (0) target = $region17
    $region16: #{tpu_custom_call.1} parent=1 // pred_region
      %967 = vsyncadd [#allocation3], 0
      %s968 = sshll.u32 [#allocation2], 4
      %s969 = int_to_ptr.vmem [resolvable:$true] %s968
      %s970 = sshll.u32 %s3, 4
      %s971 = int_to_ptr.hbm [resolvable:$true] %s970
      %976 = dma.vmem_to_hbm [thread:$0]  %s969, 2048, %s971, [#allocation3], 128, 128, 8
    $region17: #{tpu_custom_call.1} parent=1 // pred_fallthru
      _
    // Predicated region
    $region18: #{tpu_custom_call.1} parent=1 // pred_check
      _
    $region19: #{tpu_custom_call.1} parent=1 // pred_check_branch
      %978 = sbr.rel (0) target = $region21
    $region20: #{tpu_custom_call.1} parent=1 // pred_region
      %980 = dma.done [#allocation3], 2048
    $region21: #{tpu_custom_call.1} parent=1 // pred_fallthru
      _
    %981 = vsyncpa [#allocation3], 1

</llo_original>
